<compile_context>
chip_gen: v5e
topology: v5e:2x2
jax: 0.10.0
libtpu: 0.0.40
codegen_flags: <defaults>
</compile_context>

<pallas_src>
import functools

import jax
import jax.numpy as jnp
from jax.experimental import pallas as pl
from jax.experimental.pallas import tpu as pltpu


_LANE = 128


def _round_up(n, m):
    return ((n + m - 1) // m) * m


def _silu(x):
    # SiLU(x) = x * sigmoid(x); sigmoid lowers to the EUP logistic unit.
    return x * jax.nn.sigmoid(x)


def _mlp_kernel(x_ref, w1_ref, b1_ref, w2_ref, b2_ref, w3_ref, b3_ref, o_ref,
                *, compute_dtype):
    # x.float() semantics first; optionally feed the MXU bf16 operands while
    # keeping f32 accumulation and f32 bias + SiLU.
    x = x_ref[...].astype(jnp.float32)

    h = jnp.dot(x.astype(compute_dtype), w1_ref[...].astype(compute_dtype),
                preferred_element_type=jnp.float32)
    h = _silu(h + b1_ref[...])

    h = jnp.dot(h.astype(compute_dtype), w2_ref[...].astype(compute_dtype),
                preferred_element_type=jnp.float32)
    h = _silu(h + b2_ref[...])

    o = jnp.dot(h.astype(compute_dtype), w3_ref[...].astype(compute_dtype),
                preferred_element_type=jnp.float32)
    o_ref[...] = (o + b3_ref[...]).astype(o_ref.dtype)


def mlp_pallas(x, params, *, use_bf16_matmul=False, tm=None):
    """x: [B, dim_in] (any float dtype); params: dict w1,b1,w2,b2,w3,b3.

    Weights are stored [in_features, out_features]; biases are [1, out_features].
    """
    w1, b1, w2, b2, w3, b3 = (params[k] for k in ("w1", "b1", "w2", "b2", "w3", "b3"))
    B, dim_in = x.shape
    hidden = w1.shape[1]
    dim_out = w3.shape[1]

    # ---- lane-dense feature padding (hidden / output padded to 128 lanes) ----
    hid_p = _round_up(hidden, _LANE)
    out_p = _round_up(dim_out, _LANE)

    f32 = jnp.float32
    w1p = jnp.pad(w1.astype(f32), ((0, 0), (0, hid_p - hidden)))
    b1p = jnp.pad(b1.astype(f32), ((0, 0), (0, hid_p - hidden)))
    w2p = jnp.pad(w2.astype(f32), ((0, hid_p - hidden), (0, hid_p - hidden)))
    b2p = jnp.pad(b2.astype(f32), ((0, 0), (0, hid_p - hidden)))
    w3p = jnp.pad(w3.astype(f32), ((0, hid_p - hidden), (0, out_p - dim_out)))
    b3p = jnp.pad(b3.astype(f32), ((0, 0), (0, out_p - dim_out)))

    # ---- batch tiling: 1-D grid over rows, tile kept modest for v7x VMEM ----
    if tm is None:
        tm = 256 if B >= 256 else _round_up(B, 8)
    b_pad = _round_up(B, tm)
    x_p = jnp.pad(x.astype(f32), ((0, b_pad - B), (0, 0)))

    grid = (b_pad // tm,)
    compute_dtype = jnp.bfloat16 if use_bf16_matmul else jnp.float32

    const = lambda i: (0, 0)  # weights/biases: VMEM-resident across grid steps

    flops = 2 * b_pad * (dim_in * hid_p + hid_p * hid_p + hid_p * out_p)
    bytes_accessed = 4 * (x_p.size + w1p.size + b1p.size + w2p.size + b2p.size
                          + w3p.size + b3p.size + b_pad * out_p)

    out_padded = pl.pallas_call(
        functools.partial(_mlp_kernel, compute_dtype=compute_dtype),
        out_shape=jax.ShapeDtypeStruct((b_pad, out_p), jnp.float32),
        grid=grid,
        in_specs=[
            pl.BlockSpec((tm, dim_in), lambda i: (i, 0)),   # x tile streams
            pl.BlockSpec((dim_in, hid_p), const),           # w1
            pl.BlockSpec((1, hid_p), const),                # b1
            pl.BlockSpec((hid_p, hid_p), const),            # w2
            pl.BlockSpec((1, hid_p), const),                # b2
            pl.BlockSpec((hid_p, out_p), const),            # w3
            pl.BlockSpec((1, out_p), const),                # b3
        ],
        out_specs=pl.BlockSpec((tm, out_p), lambda i: (i, 0)),  # lane-dense store
        compiler_params=pltpu.CompilerParams(
            dimension_semantics=("parallel",),          # shard batch across TCs
            vmem_limit_bytes=32 * 1024 * 1024,
        ),
        cost_estimate=pl.CostEstimate(
            flops=flops,
            transcendentals=2 * b_pad * hid_p,
            bytes_accessed=bytes_accessed,
        ),
    )(x_p, w1p, b1p, w2p, b2p, w3p, b3p)

    return out_padded[:B, :dim_out]


def init_mlp_params(key, dim_in, dim_out, expansion_factor=2.0, depth=2):
    """Deterministic synthetic init (uniform, fan_in scaled), nn.Linear shapes."""
    assert depth == 2, "script instantiates the default depth=2 MLP"
    hidden = int(expansion_factor * dim_out)
    ks = jax.random.split(key, 6)

    def lin(kw, kb, fan_in, fan_out):
        bound = 1.0 / jnp.sqrt(fan_in)
        w = jax.random.uniform(kw, (fan_in, fan_out), jnp.float32, -bound, bound)
        b = jax.random.uniform(kb, (1, fan_out), jnp.float32, -bound, bound)
        return w, b

    w1, b1 = lin(ks[0], ks[1], dim_in, hidden)
    w2, b2 = lin(ks[2], ks[3], hidden, hidden)
    w3, b3 = lin(ks[4], ks[5], hidden, dim_out)
    return dict(w1=w1, b1=b1, w2=w2, b2=b2, w3=w3, b3=b3)


def mlp_reference(x, p):
    """Pure-JAX reference mirroring the PyTorch forward (norm=False default)."""
    h = jnp.dot(x.astype(jnp.float32), p["w1"]) + p["b1"]
    h = h * jax.nn.sigmoid(h)
    h = jnp.dot(h, p["w2"]) + p["b2"]
    h = h * jax.nn.sigmoid(h)
    return jnp.dot(h, p["w3"]) + p["b3"]


# TODO(synk): norm=True (LayerNorm between blocks) is not implemented; the
# module default norm=False is what this kernel covers.

if __name__ == "__main__":
    key = jax.random.PRNGKey(0)
    k_x, k_p = jax.random.split(key)

    batch, dim_in, dim_out = 8, 16, 32          # hidden = 64
    x = jax.random.normal(k_x, (batch, dim_in), dtype=jnp.float32)
    params = init_mlp_params(k_p, dim_in, dim_out)

    ref = mlp_reference(x, params)

    # f32 MXU path: matches the PyTorch float() semantics tightly.
    out = jax.block_until_ready(mlp_pallas(x, params))
    assert out.shape == (batch, dim_out)
    assert jnp.max(jnp.abs(out - ref)) < 1e-4

    # bf16 MXU operands (f32 accumulation) — the v6e/v7x throughput path.
    out_bf16 = jax.block_until_ready(mlp_pallas(x, params, use_bf16_matmul=True))
    assert out_bf16.shape == (batch, dim_out)
    assert jnp.max(jnp.abs(out_bf16 - ref)) < 1e-1

    print("KERNEL_OK")
</pallas_src>

<mosaic_0001>
module attributes {stable_mosaic.version = 11 : i64} {
  func.func @_mlp_kernel(%arg0: i32, %arg1: memref<8x16xf32, #tpu.memory_space<vmem>>, %arg2: memref<16x128xf32, #tpu.memory_space<vmem>>, %arg3: memref<1x128xf32, #tpu.memory_space<vmem>>, %arg4: memref<128x128xf32, #tpu.memory_space<vmem>>, %arg5: memref<1x128xf32, #tpu.memory_space<vmem>>, %arg6: memref<128x128xf32, #tpu.memory_space<vmem>>, %arg7: memref<1x128xf32, #tpu.memory_space<vmem>>, %arg8: memref<8x128xf32, #tpu.memory_space<vmem>>) attributes {dimension_semantics = [#tpu.dimension_semantics<parallel>], iteration_bounds = array<i64: 1>, scalar_prefetch = 0 : i64, scratch_operands = 0 : i64, tpu.core_type = #tpu.core_type<tc>, window_params = [{transform_indices = @transform_0, window_bounds = array<i64: 8, 16>}, {pipeline_mode = #tpu.pipeline_mode<synchronous>, transform_indices = @transform_1, window_bounds = array<i64: 16, 128>}, {pipeline_mode = #tpu.pipeline_mode<synchronous>, transform_indices = @transform_2, window_bounds = array<i64: 1, 128>}, {pipeline_mode = #tpu.pipeline_mode<synchronous>, transform_indices = @transform_3, window_bounds = array<i64: 128, 128>}, {pipeline_mode = #tpu.pipeline_mode<synchronous>, transform_indices = @transform_4, window_bounds = array<i64: 1, 128>}, {pipeline_mode = #tpu.pipeline_mode<synchronous>, transform_indices = @transform_5, window_bounds = array<i64: 128, 128>}, {pipeline_mode = #tpu.pipeline_mode<synchronous>, transform_indices = @transform_6, window_bounds = array<i64: 1, 128>}, {transform_indices = @transform_7, window_bounds = array<i64: 8, 128>}]} {
    %c0 = arith.constant 0 : index
    %c0_0 = arith.constant 0 : index
    %0 = vector.load %arg1[%c0, %c0_0] : memref<8x16xf32, #tpu.memory_space<vmem>>, vector<8x16xf32>
    %c0_1 = arith.constant 0 : index
    %c0_2 = arith.constant 0 : index
    %1 = vector.load %arg2[%c0_1, %c0_2] : memref<16x128xf32, #tpu.memory_space<vmem>>, vector<16x128xf32>
    %cst = arith.constant dense<0.000000e+00> : vector<8x128xf32>
    %2 = tpu.matmul %0, %1, %cst {dimension_numbers = #tpu.dot_dimension_numbers<[1], [0], [0], [1], [0, 0, 1, 1], [], []>} : vector<8x16xf32>, vector<16x128xf32>, vector<8x128xf32> -> vector<8x128xf32>
    %c0_3 = arith.constant 0 : index
    %c0_4 = arith.constant 0 : index
    %3 = vector.load %arg3[%c0_3, %c0_4] : memref<1x128xf32, #tpu.memory_space<vmem>>, vector<1x128xf32>
    %4 = vector.broadcast %3 : vector<1x128xf32> to vector<8x128xf32>
    %5 = arith.addf %2, %4 : vector<8x128xf32>
    %6 = arith.negf %5 : vector<8x128xf32>
    %7 = math.exp %6 : vector<8x128xf32>
    %cst_5 = arith.constant 1.000000e+00 : f32
    %8 = vector.broadcast %cst_5 : f32 to vector<8x128xf32>
    %9 = arith.addf %8, %7 : vector<8x128xf32>
    %10 = arith.divf %8, %9 : vector<8x128xf32>
    %11 = arith.mulf %5, %10 : vector<8x128xf32>
    %c0_6 = arith.constant 0 : index
    %c0_7 = arith.constant 0 : index
    %12 = vector.load %arg4[%c0_6, %c0_7] : memref<128x128xf32, #tpu.memory_space<vmem>>, vector<128x128xf32>
    %cst_8 = arith.constant dense<0.000000e+00> : vector<8x128xf32>
    %13 = tpu.matmul %11, %12, %cst_8 {dimension_numbers = #tpu.dot_dimension_numbers<[1], [0], [0], [1], [0, 0, 1, 1], [], []>} : vector<8x128xf32>, vector<128x128xf32>, vector<8x128xf32> -> vector<8x128xf32>
    %c0_9 = arith.constant 0 : index
    %c0_10 = arith.constant 0 : index
    %14 = vector.load %arg5[%c0_9, %c0_10] : memref<1x128xf32, #tpu.memory_space<vmem>>, vector<1x128xf32>
    %15 = vector.broadcast %14 : vector<1x128xf32> to vector<8x128xf32>
    %16 = arith.addf %13, %15 : vector<8x128xf32>
    %17 = arith.negf %16 : vector<8x128xf32>
    %18 = math.exp %17 : vector<8x128xf32>
    %cst_11 = arith.constant 1.000000e+00 : f32
    %19 = vector.broadcast %cst_11 : f32 to vector<8x128xf32>
    %20 = arith.addf %19, %18 : vector<8x128xf32>
    %21 = arith.divf %19, %20 : vector<8x128xf32>
    %22 = arith.mulf %16, %21 : vector<8x128xf32>
    %c0_12 = arith.constant 0 : index
    %c0_13 = arith.constant 0 : index
    %23 = vector.load %arg6[%c0_12, %c0_13] : memref<128x128xf32, #tpu.memory_space<vmem>>, vector<128x128xf32>
    %cst_14 = arith.constant dense<0.000000e+00> : vector<8x128xf32>
    %24 = tpu.matmul %22, %23, %cst_14 {dimension_numbers = #tpu.dot_dimension_numbers<[1], [0], [0], [1], [0, 0, 1, 1], [], []>} : vector<8x128xf32>, vector<128x128xf32>, vector<8x128xf32> -> vector<8x128xf32>
    %c0_15 = arith.constant 0 : index
    %c0_16 = arith.constant 0 : index
    %25 = vector.load %arg7[%c0_15, %c0_16] : memref<1x128xf32, #tpu.memory_space<vmem>>, vector<1x128xf32>
    %26 = vector.broadcast %25 : vector<1x128xf32> to vector<8x128xf32>
    %27 = arith.addf %24, %26 : vector<8x128xf32>
    %c0_17 = arith.constant 0 : index
    %c0_18 = arith.constant 0 : index
    %28 = vector.load %arg8[%c0_17, %c0_18] : memref<8x128xf32, #tpu.memory_space<vmem>>, vector<8x128xf32>
    tpu.vector_store %arg8[%c0_17, %c0_18], %27 {strides = array<i32>} : memref<8x128xf32, #tpu.memory_space<vmem>>, vector<8x128xf32>,
    return
  }
  func.func @transform_0(%arg0: i32) -> (i32, i32) {
    %c0_i32 = arith.constant 0 : i32
    %c0_i32_0 = arith.constant 0 : i32
    return %arg0, %c0_i32 : i32, i32
  }
  func.func @transform_1(%arg0: i32) -> (i32, i32) {
    %c0_i32 = arith.constant 0 : i32
    %c0_i32_0 = arith.constant 0 : i32
    %c0_i32_1 = arith.constant 0 : i32
    return %c0_i32, %c0_i32_0 : i32, i32
  }
  func.func @transform_2(%arg0: i32) -> (i32, i32) {
    %c0_i32 = arith.constant 0 : i32
    %c0_i32_0 = arith.constant 0 : i32
    %c0_i32_1 = arith.constant 0 : i32
    return %c0_i32, %c0_i32_0 : i32, i32
  }
  func.func @transform_3(%arg0: i32) -> (i32, i32) {
    %c0_i32 = arith.constant 0 : i32
    %c0_i32_0 = arith.constant 0 : i32
    %c0_i32_1 = arith.constant 0 : i32
    return %c0_i32, %c0_i32_0 : i32, i32
  }
  func.func @transform_4(%arg0: i32) -> (i32, i32) {
    %c0_i32 = arith.constant 0 : i32
    %c0_i32_0 = arith.constant 0 : i32
    %c0_i32_1 = arith.constant 0 : i32
    return %c0_i32, %c0_i32_0 : i32, i32
  }
  func.func @transform_5(%arg0: i32) -> (i32, i32) {
    %c0_i32 = arith.constant 0 : i32
    %c0_i32_0 = arith.constant 0 : i32
    %c0_i32_1 = arith.constant 0 : i32
    return %c0_i32, %c0_i32_0 : i32, i32
  }
  func.func @transform_6(%arg0: i32) -> (i32, i32) {
    %c0_i32 = arith.constant 0 : i32
    %c0_i32_0 = arith.constant 0 : i32
    %c0_i32_1 = arith.constant 0 : i32
    return %c0_i32, %c0_i32_0 : i32, i32
  }
  func.func @transform_7(%arg0: i32) -> (i32, i32) {
    %c0_i32 = arith.constant 0 : i32
    %c0_i32_0 = arith.constant 0 : i32
    return %arg0, %c0_i32 : i32, i32
  }
}

</mosaic_0001>

<llo_original>
// kernel: tpu_custom_call.1
$region0: #{tpu_custom_call.1}
  #allocation0 [shape = 'u32[]', space=smem, size = 0x4, offset = 0x4, fixed_abs, tag = 'smem constant byte address 0x4 - core index']
  #allocation1 [shape = 'u32[72,128]{1,0:T(1,128)}', space=vmem, size = 0x9000, scoped, tag = 'internal scratch']
  %s0 = inlined_call_operand.hbm [shape: f32[8,16], index: 0, kind: input, shape index: {}]
  %s1 = inlined_call_operand.hbm [shape: f32[16,128], index: 1, kind: input, shape index: {}]
  %s2 = inlined_call_operand.vmem [shape: f32[1,128], index: 2, kind: input, shape index: {}]
  %s3 = inlined_call_operand.hbm [shape: f32[128,128], index: 3, kind: input, shape index: {}]
  %s4 = inlined_call_operand.vmem [shape: f32[1,128], index: 4, kind: input, shape index: {}]
  %s5 = inlined_call_operand.hbm [shape: f32[128,128], index: 5, kind: input, shape index: {}]
  %s6 = inlined_call_operand.vmem [shape: f32[1,128], index: 6, kind: input, shape index: {}]
  %s7 = inlined_call_operand.hbm [shape: f32[8,128], index: 7, kind: output, shape index: {}]
  %s8 = sld [smem:[#allocation0]]
  $region54: #{tpu_custom_call.1} parent=0
    _
  %s10 = ssub.s32 1, %s8
  %s11 = scalar_select 0, %s10, %s8
  $region1: #{tpu_custom_call.1} parent=0
    #allocation2 [shape = 'u8[4096]{0}', space=vmem, size = 0x1000, scoped, tag = 'input window, operand 0, single buffered']
    #allocation3 [shape = 's32[1]{0}', space=sflag, size = 0x4, scoped, tag = 'scoped memory for tpu_custom_call.1']
    #allocation4 [shape = 's32[1]{0}', space=sflag, size = 0x4, scoped, tag = 'scoped memory for tpu_custom_call.1']
    #allocation5 [shape = 'u8[8192]{0}', space=vmem, size = 0x2000, scoped, tag = 'input window, operand 1, single buffered']
    #allocation6 [shape = 's32[1]{0}', space=sflag, size = 0x4, scoped, tag = 'scoped memory for tpu_custom_call.1']
    #allocation7 [shape = 'u8[65536]{0}', space=vmem, size = 0x10000, scoped, tag = 'input window, operand 3, single buffered']
    #allocation8 [shape = 'u8[65536]{0}', space=vmem, size = 0x10000, scoped, tag = 'input window, operand 5, single buffered']
    #allocation9 [shape = 's32[1]{0}', space=sflag, size = 0x4, scoped, tag = 'scoped memory for tpu_custom_call.1']
    #allocation10 [shape = 'u8[4096]{0}', space=vmem, size = 0x1000, scoped, tag = 'output window, operand 0, single buffered']
    %12 = vsyncpa [#allocation3], 0
    %13 = vsyncpa [#allocation6], 0
    %14 = vsyncpa [#allocation9], 0
    %15 = vsyncpa [#allocation4], 0
    // Predicated region
    $region2: #{tpu_custom_call.1} parent=1 // pred_check
      _
    $region3: #{tpu_custom_call.1} parent=1 // pred_check_branch
      %17 = sbr.rel (0) target = $region5
    $region4: #{tpu_custom_call.1} parent=1 // pred_region
      %19 = vsyncadd [#allocation3], 0
      %s21 = sshll.u32 %s0, 4
      %s22 = int_to_ptr.hbm [resolvable:$true] %s21
      %s23 = sshll.u32 [#allocation2], 4
      %s24 = int_to_ptr.vmem [resolvable:$true] %s23
      %26 = dma.hbm_to_vmem [thread:$0]  %s22, 128, %s24, [#allocation3]
    $region5: #{tpu_custom_call.1} parent=1 // pred_fallthru
      _
    // Predicated region
    $region6: #{tpu_custom_call.1} parent=1 // pred_check
      _
    $region7: #{tpu_custom_call.1} parent=1 // pred_check_branch
      %28 = sbr.rel (0) target = $region9
    $region8: #{tpu_custom_call.1} parent=1 // pred_region
      %30 = vsyncadd [#allocation6], 0
      %s31 = sshll.u32 %s1, 4
      %s32 = int_to_ptr.hbm [resolvable:$true] %s31
      %s33 = sshll.u32 [#allocation5], 4
      %s34 = int_to_ptr.vmem [resolvable:$true] %s33
      %39 = dma.hbm_to_vmem [thread:$0]  %s32, 256, %s34, [#allocation6], 128, 128, 8
    $region9: #{tpu_custom_call.1} parent=1 // pred_fallthru
      _
    // Predicated region
    $region10: #{tpu_custom_call.1} parent=1 // pred_check
      _
    $region11: #{tpu_custom_call.1} parent=1 // pred_check_branch
      %41 = sbr.rel (0) target = $region13
    $region12: #{tpu_custom_call.1} parent=1 // pred_region
      _
    $region13: #{tpu_custom_call.1} parent=1 // pred_fallthru
      _
    // Predicated region
    $region14: #{tpu_custom_call.1} parent=1 // pred_check
      _
    $region15: #{tpu_custom_call.1} parent=1 // pred_check_branch
      %43 = sbr.rel (0) target = $region17
    $region16: #{tpu_custom_call.1} parent=1 // pred_region
      %45 = vsyncadd [#allocation6], 0
      %s46 = sshll.u32 %s3, 4
      %s47 = int_to_ptr.hbm [resolvable:$true] %s46
      %s48 = sshll.u32 [#allocation7], 4
      %s49 = int_to_ptr.vmem [resolvable:$true] %s48
      %54 = dma.hbm_to_vmem [thread:$0]  %s47, 2048, %s49, [#allocation6], 128, 128, 8
    $region17: #{tpu_custom_call.1} parent=1 // pred_fallthru
      _
    // Predicated region
    $region18: #{tpu_custom_call.1} parent=1 // pred_check
      _
    $region19: #{tpu_custom_call.1} parent=1 // pred_check_branch
      %56 = sbr.rel (0) target = $region21
    $region20: #{tpu_custom_call.1} parent=1 // pred_region
      _
    $region21: #{tpu_custom_call.1} parent=1 // pred_fallthru
      _
    // Predicated region
    $region22: #{tpu_custom_call.1} parent=1 // pred_check
      _
    $region23: #{tpu_custom_call.1} parent=1 // pred_check_branch
      %58 = sbr.rel (0) target = $region25
    $region24: #{tpu_custom_call.1} parent=1 // pred_region
      %60 = vsyncadd [#allocation9], 0
      %s61 = sshll.u32 %s5, 4
      %s62 = int_to_ptr.hbm [resolvable:$true] %s61
      %s63 = sshll.u32 [#allocation8], 4
      %s64 = int_to_ptr.vmem [resolvable:$true] %s63
      %69 = dma.hbm_to_vmem [thread:$0]  %s62, 2048, %s64, [#allocation9], 128, 128, 8
    $region25: #{tpu_custom_call.1} parent=1 // pred_fallthru
      _
    // Predicated region
    $region26: #{tpu_custom_call.1} parent=1 // pred_check
      _
    $region27: #{tpu_custom_call.1} parent=1 // pred_check_branch
      %71 = sbr.rel (0) target = $region29
    $region28: #{tpu_custom_call.1} parent=1 // pred_region
      _
    $region29: #{tpu_custom_call.1} parent=1 // pred_fallthru
      _
    // Predicated region
    $region30: #{tpu_custom_call.1} parent=1 // pred_check
      _
    $region31: #{tpu_custom_call.1} parent=1 // pred_check_branch
      %73 = sbr.rel (0) target = $region33
    $region32: #{tpu_custom_call.1} parent=1 // pred_region
      %75 = dma.done [#allocation3], 128
    $region33: #{tpu_custom_call.1} parent=1 // pred_fallthru
      _
    // Predicated region
    $region34: #{tpu_custom_call.1} parent=1 // pred_check
      _
    $region35: #{tpu_custom_call.1} parent=1 // pred_check_branch
      %77 = sbr.rel (0) target = $region37
    $region36: #{tpu_custom_call.1} parent=1 // pred_region
      %79 = dma.done [#allocation6], 256
    $region37: #{tpu_custom_call.1} parent=1 // pred_fallthru
      _
    // Predicated region
    $region38: #{tpu_custom_call.1} parent=1 // pred_check
      _
    $region39: #{tpu_custom_call.1} parent=1 // pred_check_branch
      %81 = sbr.rel (0) target = $region41
    $region40: #{tpu_custom_call.1} parent=1 // pred_region
      %83 = dma.done [#allocation6], 2048
    $region41: #{tpu_custom_call.1} parent=1 // pred_fallthru
      _
    // Predicated region
    $region42: #{tpu_custom_call.1} parent=1 // pred_check
      _
    $region43: #{tpu_custom_call.1} parent=1 // pred_check_branch
      %85 = sbr.rel (0) target = $region45
    $region44: #{tpu_custom_call.1} parent=1 // pred_region
      %87 = dma.done [#allocation9], 2048
    $region45: #{tpu_custom_call.1} parent=1 // pred_fallthru
      _
    %v88 = vld [vmem:[#allocation2] sm:$0xff]
    %v89 = vld [vmem:[#allocation5] sm:$0xff]
    %v90 = vld [vmem:[#allocation5 + $0x8] sm:$0xff]
    %v91 = vld [vmem:[%s2] sm:$0x1]
    %v93 = vperm.slane %v91, 0
    %vm95 = vcmask 130048
    %v97 = vsel %vm95, %v88, 0
    %99 = vmatpush.msra.mxu0 0.0
    %100 = vmatpush.msra.mxu0 0.0
    %101 = vmatpush.msra.mxu0 0.0
    %102 = vmatpush.msra.mxu0 0.0
    %103 = vmatpush.msra.mxu0 0.0
    %104 = vmatpush.msra.mxu0 0.0
    %105 = vmatpush.msra.mxu0 0.0
    %106 = vmatpush.msra.mxu0 0.0
    %107 = vmatpush.msra.mxu0 0.0
    %108 = vmatpush.msra.mxu0 0.0
    %109 = vmatpush.msra.mxu0 0.0
    %110 = vmatpush.msra.mxu0 0.0
    %111 = vmatpush.msra.mxu0 0.0
    %112 = vmatpush.msra.mxu0 0.0
    %113 = vmatpush.msra.mxu0 %v90
    %114 = vmatpush.msra.mxu0 %v89
    %115 = vmatmul.f32.gmra.mxu0 %v97
    %v116 = vpop.f32.mrf.mxu0
    %v117 = vadd.f32 %v93, %v116
    %118 = vdwg.mxu0
    %v119 = vxor.u32 %v117, 2147483648
    %v120 = vmul.f32 %v119, 1.442695
    %v121 = vpow.pop %v120
    %v122 = vadd.f32 %v121, 1.0
    %v123 = vrcp.pop %v122
    %v124 = vmul.f32 %v122, %v123
    %v125 = vsub.f32 1.0, %v124
    %v126 = vmul.f32 %v123, %v125
    %v127 = vadd.f32 %v123, %v126
    %vm128 = vweird.f32 %v122
    %vm129 = vweird.f32 %v123
    %vm130 = vmor %vm128, %vm129
    %v131 = vsel %vm130, %v123, %v127
    %v132 = vand.u32 2147483647, %v122
    %vm133 = vcmp.eq.f32.partialorder %v132, 8.507059e+37
    %v134 = vand.u32 %v122, 2147483648
    %v135 = vor.u32 1.1754944e-38, %v134
    %v136 = vsel %vm133, %v135, %v131
    %v137 = vmul.f32 1.0, %v136
    %v138 = vmul.f32 %v117, %v137
    %v139 = vld [vmem:[#allocation7] sm:$0xff]
    %v140 = vld [vmem:[#allocation7 + $0x8] sm:$0xff]
    %v141 = vld [vmem:[#allocation7 + $0x10] sm:$0xff]
    %v142 = vld [vmem:[#allocation7 + $0x18] sm:$0xff]
    %v143 = vld [vmem:[#allocation7 + $0x20] sm:$0xff]
    %v144 = vld [vmem:[#allocation7 + $0x28] sm:$0xff]
    %v145 = vld [vmem:[#allocation7 + $0x30] sm:$0xff]
    %v146 = vld [vmem:[#allocation7 + $0x38] sm:$0xff]
    %v147 = vld [vmem:[#allocation7 + $0x40] sm:$0xff]
    %v148 = vld [vmem:[#allocation7 + $0x48] sm:$0xff]
    %v149 = vld [vmem:[#allocation7 + $0x50] sm:$0xff]
    %v150 = vld [vmem:[#allocation7 + $0x58] sm:$0xff]
    %v151 = vld [vmem:[#allocation7 + $0x60] sm:$0xff]
    %v152 = vld [vmem:[#allocation7 + $0x68] sm:$0xff]
    %v153 = vld [vmem:[#allocation7 + $0x70] sm:$0xff]
    %v154 = vld [vmem:[#allocation7 + $0x78] sm:$0xff]
    %v155 = vld [vmem:[%s4] sm:$0x1]
    %v157 = vperm.slane %v155, 0
    %159 = vmatpush.msra.mxu0 %v154
    %160 = vmatpush.msra.mxu0 %v153
    %161 = vmatpush.msra.mxu0 %v152
    %162 = vmatpush.msra.mxu0 %v151
    %163 = vmatpush.msra.mxu0 %v150
    %164 = vmatpush.msra.mxu0 %v149
    %165 = vmatpush.msra.mxu0 %v148
    %166 = vmatpush.msra.mxu0 %v147
    %167 = vmatpush.msra.mxu0 %v146
    %168 = vmatpush.msra.mxu0 %v145
    %169 = vmatpush.msra.mxu0 %v144
    %170 = vmatpush.msra.mxu0 %v143
    %171 = vmatpush.msra.mxu0 %v142
    %172 = vmatpush.msra.mxu0 %v141
    %173 = vmatpush.msra.mxu0 %v140
    %174 = vmatpush.msra.mxu0 %v139
    %175 = vmatmul.f32.gmra.mxu0 %v138
    %v176 = vpop.f32.mrf.mxu0
    %v177 = vadd.f32 %v157, %v176
    %178 = vdwg.mxu0
    %v179 = vxor.u32 %v177, 2147483648
    %v180 = vmul.f32 %v179, 1.442695
    %v181 = vpow.pop %v180
    %v182 = vadd.f32 %v181, 1.0
    %v183 = vrcp.pop %v182
    %v184 = vmul.f32 %v182, %v183
    %v185 = vsub.f32 1.0, %v184
    %v186 = vmul.f32 %v183, %v185
    %v187 = vadd.f32 %v183, %v186
    %vm188 = vweird.f32 %v182
    %vm189 = vweird.f32 %v183
    %vm190 = vmor %vm188, %vm189
    %v191 = vsel %vm190, %v183, %v187
    %v192 = vand.u32 2147483647, %v182
    %vm193 = vcmp.eq.f32.partialorder %v192, 8.507059e+37
    %v194 = vand.u32 %v182, 2147483648
    %v195 = vor.u32 1.1754944e-38, %v194
    %v196 = vsel %vm193, %v195, %v191
    %v197 = vmul.f32 1.0, %v196
    %v198 = vmul.f32 %v177, %v197
    %v199 = vld [vmem:[#allocation8] sm:$0xff]
    %v200 = vld [vmem:[#allocation8 + $0x8] sm:$0xff]
    %v201 = vld [vmem:[#allocation8 + $0x10] sm:$0xff]
    %v202 = vld [vmem:[#allocation8 + $0x18] sm:$0xff]
    %v203 = vld [vmem:[#allocation8 + $0x20] sm:$0xff]
    %v204 = vld [vmem:[#allocation8 + $0x28] sm:$0xff]
    %v205 = vld [vmem:[#allocation8 + $0x30] sm:$0xff]
    %v206 = vld [vmem:[#allocation8 + $0x38] sm:$0xff]
    %v207 = vld [vmem:[#allocation8 + $0x40] sm:$0xff]
    %v208 = vld [vmem:[#allocation8 + $0x48] sm:$0xff]
    %v209 = vld [vmem:[#allocation8 + $0x50] sm:$0xff]
    %v210 = vld [vmem:[#allocation8 + $0x58] sm:$0xff]
    %v211 = vld [vmem:[#allocation8 + $0x60] sm:$0xff]
    %v212 = vld [vmem:[#allocation8 + $0x68] sm:$0xff]
    %v213 = vld [vmem:[#allocation8 + $0x70] sm:$0xff]
    %v214 = vld [vmem:[#allocation8 + $0x78] sm:$0xff]
    %v215 = vld [vmem:[%s6] sm:$0x1]
    %v217 = vperm.slane %v215, 0
    %219 = vmatpush.msra.mxu0 %v214
    %220 = vmatpush.msra.mxu0 %v213
    %221 = vmatpush.msra.mxu0 %v212
    %222 = vmatpush.msra.mxu0 %v211
    %223 = vmatpush.msra.mxu0 %v210
    %224 = vmatpush.msra.mxu0 %v209
    %225 = vmatpush.msra.mxu0 %v208
    %226 = vmatpush.msra.mxu0 %v207
    %227 = vmatpush.msra.mxu0 %v206
    %228 = vmatpush.msra.mxu0 %v205
    %229 = vmatpush.msra.mxu0 %v204
    %230 = vmatpush.msra.mxu0 %v203
    %231 = vmatpush.msra.mxu0 %v202
    %232 = vmatpush.msra.mxu0 %v201
    %233 = vmatpush.msra.mxu0 %v200
    %234 = vmatpush.msra.mxu0 %v199
    %235 = vmatmul.f32.gmra.mxu0 %v198
    %v236 = vpop.f32.mrf.mxu0
    %v237 = vadd.f32 %v217, %v236
    %238 = vdwg.mxu0
    %239 = vst [vmem:[#allocation10] sm:$0xff] %v237
    // Predicated region
    $region46: #{tpu_custom_call.1} parent=1 // pred_check
      _
    $region47: #{tpu_custom_call.1} parent=1 // pred_check_branch
      %241 = sbr.rel (0) target = $region49
    $region48: #{tpu_custom_call.1} parent=1 // pred_region
      %243 = vsyncadd [#allocation4], 0
      %s245 = sshll.u32 [#allocation10], 4
      %s246 = int_to_ptr.vmem [resolvable:$true] %s245
      %s247 = sshll.u32 %s7, 4
      %s248 = int_to_ptr.hbm [resolvable:$true] %s247
      %250 = dma.vmem_to_hbm [thread:$0]  %s246, 128, %s248, [#allocation4]
    $region49: #{tpu_custom_call.1} parent=1 // pred_fallthru
      _
    // Predicated region
    $region50: #{tpu_custom_call.1} parent=1 // pred_check
      _
    $region51: #{tpu_custom_call.1} parent=1 // pred_check_branch
      %252 = sbr.rel (0) target = $region53
    $region52: #{tpu_custom_call.1} parent=1 // pred_region
      %254 = dma.done [#allocation4], 128
    $region53: #{tpu_custom_call.1} parent=1 // pred_fallthru
      _
    %255 = vsyncpa [#allocation3], 1
    %256 = vsyncpa [#allocation6], 1
    %257 = vsyncpa [#allocation9], 1
    %258 = vsyncpa [#allocation4], 1

</llo_original>
